<compile_context>
chip_gen: v7x
topology: tpu7x:2x2x1
jax: 0.10.0
libtpu: 0.0.40
codegen_flags: <defaults>
</compile_context>

<pallas_src>
import functools

import jax
import jax.numpy as jnp
from jax.experimental import pallas as pl
from jax.experimental.pallas import tpu as pltpu


def _round_up(n, m):
    return (n + m - 1) // m * m


def _policy_kernel(x_ref, w_ref, b_ref, out_ref, *, w2_start, w3_start, out_dim):
    """Fused mu/logvar MLP. Operands are already packed & lane-padded to 128."""
    x = x_ref[...]                                   # (B, w2_start)

    w1 = w_ref[0:w2_start, :]                        # (in_p, D)
    w2 = w_ref[w2_start:w3_start, :]                 # (D, D)    block-diagonal
    w3 = w_ref[w3_start:w_ref.shape[0], :]           # (D, D)    block-diagonal
    b1 = b_ref[0:1, :]                               # (1, D)
    b2 = b_ref[1:2, :]
    b3 = b_ref[2:3, :]

    h1 = jnp.tanh(jnp.dot(x, w1, preferred_element_type=jnp.float32) + b1)
    h2 = jnp.tanh(jnp.dot(h1, w2, preferred_element_type=jnp.float32) + b2)
    raw = jnp.dot(h2, w3, preferred_element_type=jnp.float32) + b3   # (B, D)

    # lanes [0, out_dim)          -> mu
    # lanes [out_dim, 2*out_dim)  -> std = exp(0.5 * logvar)
    # lanes >= 2*out_dim          -> padding (exact zeros; sliced off in wrapper)
    col = jax.lax.broadcasted_iota(jnp.int32, raw.shape, 1)
    out = jnp.where(col < out_dim, raw, jnp.exp(0.5 * raw))
    out_ref[...] = out.astype(out_ref.dtype)


def pack_params(params, input_dim, hidden_dim, output_dim):
    """Pack both branches into one weight slab + one bias slab, 128-lane padded."""
    H, O = hidden_dim, output_dim
    D = max(_round_up(2 * H, 128), _round_up(2 * O, 128))
    in_p = _round_up(input_dim, 8)          # x is zero-padded to this many cols
    w2_start = in_p
    w3_start = in_p + D
    total_rows = in_p + 2 * D

    W = jnp.zeros((total_rows, D), jnp.float32)
    # layer 1: [ w1_mu | w1_lv | 0 ]
    W = W.at[0:input_dim, 0:H].set(params["w1_mu"])
    W = W.at[0:input_dim, H:2 * H].set(params["w1_lv"])
    # layer 2: block-diag(w2_mu, w2_lv)
    W = W.at[w2_start:w2_start + H, 0:H].set(params["w2_mu"])
    W = W.at[w2_start + H:w2_start + 2 * H, H:2 * H].set(params["w2_lv"])
    # layer 3: block-diag(w3_mu, w3_lv) into the (mu | logvar) output lanes
    W = W.at[w3_start:w3_start + H, 0:O].set(params["w3_mu"])
    W = W.at[w3_start + H:w3_start + 2 * H, O:2 * O].set(params["w3_lv"])

    Bb = jnp.zeros((3, D), jnp.float32)
    Bb = Bb.at[0, 0:H].set(params["b1_mu"])
    Bb = Bb.at[0, H:2 * H].set(params["b1_lv"])
    Bb = Bb.at[1, 0:H].set(params["b2_mu"])
    Bb = Bb.at[1, H:2 * H].set(params["b2_lv"])
    Bb = Bb.at[2, 0:O].set(params["b3_mu"])
    Bb = Bb.at[2, O:2 * O].set(params["b3_lv"])

    meta = dict(in_p=in_p, w2_start=w2_start, w3_start=w3_start,
                out_dim=O, D=D)
    return W, Bb, meta


def simple_policy_forward(x, W, Bb, meta):
    """x: (B, input_dim) f32.  Returns (mu, std), each (B, output_dim)."""
    Bsz = x.shape[0]
    in_p, D, O = meta["in_p"], meta["D"], meta["out_dim"]
    if x.shape[1] != in_p:
        x = jnp.pad(x, ((0, 0), (0, in_p - x.shape[1])))

    kernel = functools.partial(
        _policy_kernel,
        w2_start=meta["w2_start"], w3_start=meta["w3_start"], out_dim=O)

    out = pl.pallas_call(
        kernel,
        out_shape=jax.ShapeDtypeStruct((Bsz, D), jnp.float32),
        in_specs=[pl.BlockSpec(memory_space=pltpu.MemorySpace.VMEM)] * 3,
        out_specs=pl.BlockSpec(memory_space=pltpu.MemorySpace.VMEM),
    )(x, W, Bb)

    return out[:, :O], out[:, O:2 * O]


def init_params(key, input_dim, hidden_dim, output_dim):
    """Deterministic synthetic init. Weights stored as (in, out) = PyTorch W.T."""
    keys = jax.random.split(key, 12)

    def lin(kw, kb, fan_in, fan_out):
        bound = 1.0 / jnp.sqrt(fan_in)
        w = jax.random.uniform(kw, (fan_in, fan_out), jnp.float32, -bound, bound)
        b = jax.random.uniform(kb, (fan_out,), jnp.float32, -bound, bound)
        return w, b

    p = {}
    p["w1_mu"], p["b1_mu"] = lin(keys[0], keys[1], input_dim, hidden_dim)
    p["w2_mu"], p["b2_mu"] = lin(keys[2], keys[3], hidden_dim, hidden_dim)
    p["w3_mu"], p["b3_mu"] = lin(keys[4], keys[5], hidden_dim, output_dim)
    p["w1_lv"], p["b1_lv"] = lin(keys[6], keys[7], input_dim, hidden_dim)
    p["w2_lv"], p["b2_lv"] = lin(keys[8], keys[9], hidden_dim, hidden_dim)
    p["w3_lv"], p["b3_lv"] = lin(keys[10], keys[11], hidden_dim, output_dim)
    return p


def reference_forward(x, p):
    def mlp(w1, b1, w2, b2, w3, b3):
        h1 = jnp.tanh(x @ w1 + b1)
        h2 = jnp.tanh(h1 @ w2 + b2)
        return h2 @ w3 + b3
    mu = mlp(p["w1_mu"], p["b1_mu"], p["w2_mu"], p["b2_mu"], p["w3_mu"], p["b3_mu"])
    lv = mlp(p["w1_lv"], p["b1_lv"], p["w2_lv"], p["b2_lv"], p["w3_lv"], p["b3_lv"])
    return mu, jnp.sqrt(jnp.exp(lv))


if __name__ == "__main__":
    input_dim, hidden_dim, output_dim = 16, 32, 4
    batch = 8

    key = jax.random.PRNGKey(0)
    kx, kp = jax.random.split(key)
    x = jax.random.normal(kx, (batch, input_dim), jnp.float32)
    params = init_params(kp, input_dim, hidden_dim, output_dim)
    W, Bb, meta = pack_params(params, input_dim, hidden_dim, output_dim)

    mu, std = simple_policy_forward(x, W, Bb, meta)
    jax.block_until_ready((mu, std))

    mu_ref, std_ref = reference_forward(x, params)
    assert jnp.allclose(mu, mu_ref, atol=1e-5, rtol=1e-5), \
        float(jnp.max(jnp.abs(mu - mu_ref)))
    assert jnp.allclose(std, std_ref, atol=1e-5, rtol=1e-5), \
        float(jnp.max(jnp.abs(std - std_ref)))

    print("KERNEL_OK")
</pallas_src>

<mosaic_0001>
module attributes {stable_mosaic.version = 11 : i64} {
  func.func @_policy_kernel(%arg0: memref<8x16xf32, #tpu.memory_space<vmem>>, %arg1: memref<272x128xf32, #tpu.memory_space<vmem>>, %arg2: memref<3x128xf32, #tpu.memory_space<vmem>>, %arg3: memref<8x128xf32, #tpu.memory_space<vmem>>) attributes {dimension_semantics = [], scalar_prefetch = 0 : i64, scratch_operands = 0 : i64, tpu.core_type = #tpu.core_type<tc>} {
    %c0 = arith.constant 0 : index
    %c0_0 = arith.constant 0 : index
    %0 = vector.load %arg0[%c0, %c0_0] : memref<8x16xf32, #tpu.memory_space<vmem>>, vector<8x16xf32>
    %c0_1 = arith.constant 0 : index
    %c0_2 = arith.constant 0 : index
    %1 = vector.load %arg1[%c0_1, %c0_2] : memref<272x128xf32, #tpu.memory_space<vmem>>, vector<16x128xf32>
    %c16 = arith.constant 16 : index
    %c0_3 = arith.constant 0 : index
    %2 = vector.load %arg1[%c16, %c0_3] : memref<272x128xf32, #tpu.memory_space<vmem>>, vector<128x128xf32>
    %c144 = arith.constant 144 : index
    %c0_4 = arith.constant 0 : index
    %3 = vector.load %arg1[%c144, %c0_4] : memref<272x128xf32, #tpu.memory_space<vmem>>, vector<128x128xf32>
    %c0_5 = arith.constant 0 : index
    %c0_6 = arith.constant 0 : index
    %4 = vector.load %arg2[%c0_5, %c0_6] : memref<3x128xf32, #tpu.memory_space<vmem>>, vector<1x128xf32>
    %c1 = arith.constant 1 : index
    %c0_7 = arith.constant 0 : index
    %5 = vector.load %arg2[%c1, %c0_7] : memref<3x128xf32, #tpu.memory_space<vmem>>, vector<1x128xf32>
    %c2 = arith.constant 2 : index
    %c0_8 = arith.constant 0 : index
    %6 = vector.load %arg2[%c2, %c0_8] : memref<3x128xf32, #tpu.memory_space<vmem>>, vector<1x128xf32>
    %cst = arith.constant dense<0.000000e+00> : vector<8x128xf32>
    %7 = tpu.matmul %0, %1, %cst {dimension_numbers = #tpu.dot_dimension_numbers<[1], [0], [0], [1], [0, 0, 1, 1], [], []>} : vector<8x16xf32>, vector<16x128xf32>, vector<8x128xf32> -> vector<8x128xf32>
    %8 = vector.broadcast %4 : vector<1x128xf32> to vector<8x128xf32>
    %9 = arith.addf %7, %8 : vector<8x128xf32>
    %10 = math.tanh %9 : vector<8x128xf32>
    %cst_9 = arith.constant dense<0.000000e+00> : vector<8x128xf32>
    %11 = tpu.matmul %10, %2, %cst_9 {dimension_numbers = #tpu.dot_dimension_numbers<[1], [0], [0], [1], [0, 0, 1, 1], [], []>} : vector<8x128xf32>, vector<128x128xf32>, vector<8x128xf32> -> vector<8x128xf32>
    %12 = vector.broadcast %5 : vector<1x128xf32> to vector<8x128xf32>
    %13 = arith.addf %11, %12 : vector<8x128xf32>
    %14 = math.tanh %13 : vector<8x128xf32>
    %cst_10 = arith.constant dense<0.000000e+00> : vector<8x128xf32>
    %15 = tpu.matmul %14, %3, %cst_10 {dimension_numbers = #tpu.dot_dimension_numbers<[1], [0], [0], [1], [0, 0, 1, 1], [], []>} : vector<8x128xf32>, vector<128x128xf32>, vector<8x128xf32> -> vector<8x128xf32>
    %16 = vector.broadcast %6 : vector<1x128xf32> to vector<8x128xf32>
    %17 = arith.addf %15, %16 : vector<8x128xf32>
    %18 = tpu.iota {dimensions = array<i32: 1>} : vector<8x128xi32>
    %c4_i32 = arith.constant 4 : i32
    %19 = vector.broadcast %c4_i32 : i32 to vector<8x128xi32>
    %20 = arith.cmpi slt, %18, %19 : vector<8x128xi32>
    %cst_11 = arith.constant 5.000000e-01 : f32
    %21 = vector.broadcast %cst_11 : f32 to vector<8x128xf32>
    %22 = arith.mulf %21, %17 : vector<8x128xf32>
    %23 = math.exp %22 : vector<8x128xf32>
    %24 = arith.select %20, %17, %23 : vector<8x128xi1>, vector<8x128xf32>
    %c0_12 = arith.constant 0 : index
    %c0_13 = arith.constant 0 : index
    %25 = vector.load %arg3[%c0_12, %c0_13] : memref<8x128xf32, #tpu.memory_space<vmem>>, vector<8x128xf32>
    tpu.vector_store %arg3[%c0_12, %c0_13], %24 {strides = array<i32>} : memref<8x128xf32, #tpu.memory_space<vmem>>, vector<8x128xf32>,
    return
  }
}

</mosaic_0001>

<llo_original>
// kernel: tpu_custom_call.1
$region0: #{tpu_custom_call.1}
  #allocation0 [shape = 'u32[]', space=smem, size = 0x4, offset = 0x4, fixed_abs, tag = 'smem constant byte address 0x4 - core index']
  #allocation1 [shape = 'u32[144,128]{1,0:T(1,128)}', space=vmem, size = 0x12000, scoped, tag = 'internal scratch']
  %s0 = inlined_call_operand.hbm [shape: f32[8,16], index: 0, kind: input, shape index: {}]
  %s1 = inlined_call_operand.hbm [shape: f32[272,128], index: 1, kind: input, shape index: {}]
  %s2 = inlined_call_operand.vmem [shape: f32[3,128], index: 2, kind: input, shape index: {}]
  %s3 = inlined_call_operand.hbm [shape: f32[8,128], index: 3, kind: output, shape index: {}]
  %s4 = sld [smem:[#allocation0]]
  $region30: #{tpu_custom_call.1} parent=0
    _
  %s6 = ssub.s32 1, %s4
  %s7 = scalar_select 0, %s6, %s4
  $region1: #{tpu_custom_call.1} parent=0
    #allocation2 [shape = 'u8[4096]{0}', space=vmem, size = 0x1000, scoped, tag = 'input window, operand 0, single buffered']
    #allocation3 [shape = 's32[1]{0}', space=sflag, size = 0x4, scoped, tag = 'scoped memory for tpu_custom_call.1']
    #allocation4 [shape = 's32[1]{0}', space=sflag, size = 0x4, scoped, tag = 'scoped memory for tpu_custom_call.1']
    #allocation5 [shape = 'u8[139264]{0}', space=vmem, size = 0x22000, scoped, tag = 'input window, operand 1, single buffered']
    #allocation6 [shape = 's32[1]{0}', space=sflag, size = 0x4, scoped, tag = 'scoped memory for tpu_custom_call.1']
    #allocation7 [shape = 'u8[4096]{0}', space=vmem, size = 0x1000, scoped, tag = 'output window, operand 0, single buffered']
    %8 = vsyncpa [#allocation3], 0
    %9 = vsyncpa [#allocation6], 0
    %10 = vsyncpa [#allocation4], 0
    // Predicated region
    $region2: #{tpu_custom_call.1} parent=1 // pred_check
      _
    $region3: #{tpu_custom_call.1} parent=1 // pred_check_branch
      %12 = sbr.rel (0) target = $region5
    $region4: #{tpu_custom_call.1} parent=1 // pred_region
      %s14 = ssub.s32 128, 128
      %15 = vsyncadd [#allocation3], %s14
      %s17 = sshll.u32 [#allocation2], 4
      %s18 = int_to_ptr.vmem [resolvable:$true] %s17
      %20 = dma.hbm_to_vmem [thread:$0]  %s0, 128, %s18, [#allocation3]
    $region5: #{tpu_custom_call.1} parent=1 // pred_fallthru
      _
    // Predicated region
    $region6: #{tpu_custom_call.1} parent=1 // pred_check
      _
    $region7: #{tpu_custom_call.1} parent=1 // pred_check_branch
      %22 = sbr.rel (0) target = $region9
    $region8: #{tpu_custom_call.1} parent=1 // pred_region
      %s24 = ssub.s32 4352, 4352
      %25 = vsyncadd [#allocation6], %s24
      %s26 = sshll.u32 [#allocation5], 4
      %s27 = int_to_ptr.vmem [resolvable:$true] %s26
      %32 = dma.hbm_to_vmem [thread:$0]  %s1, 4352, %s27, [#allocation6], 128, 128, 8
    $region9: #{tpu_custom_call.1} parent=1 // pred_fallthru
      _
    // Predicated region
    $region10: #{tpu_custom_call.1} parent=1 // pred_check
      _
    $region11: #{tpu_custom_call.1} parent=1 // pred_check_branch
      %34 = sbr.rel (0) target = $region13
    $region12: #{tpu_custom_call.1} parent=1 // pred_region
      _
    $region13: #{tpu_custom_call.1} parent=1 // pred_fallthru
      _
    // Predicated region
    $region14: #{tpu_custom_call.1} parent=1 // pred_check
      _
    $region15: #{tpu_custom_call.1} parent=1 // pred_check_branch
      %36 = sbr.rel (0) target = $region17
    $region16: #{tpu_custom_call.1} parent=1 // pred_region
      %37 = dma.done [#allocation3], 128
    $region17: #{tpu_custom_call.1} parent=1 // pred_fallthru
      _
    // Predicated region
    $region18: #{tpu_custom_call.1} parent=1 // pred_check
      _
    $region19: #{tpu_custom_call.1} parent=1 // pred_check_branch
      %39 = sbr.rel (0) target = $region21
    $region20: #{tpu_custom_call.1} parent=1 // pred_region
      %40 = dma.done [#allocation6], 4352
    $region21: #{tpu_custom_call.1} parent=1 // pred_fallthru
      _
    %v41 = vld [vmem:[#allocation2] sm:$0xff]
    %v42 = vld [vmem:[#allocation5] sm:$0xff]
    %v43 = vld [vmem:[#allocation5 + $0x8] sm:$0xff]
    %v44 = vld [vmem:[#allocation5 + $0x10] sm:$0xff]
    %v45 = vld [vmem:[#allocation5 + $0x18] sm:$0xff]
    %v46 = vld [vmem:[#allocation5 + $0x20] sm:$0xff]
    %v47 = vld [vmem:[#allocation5 + $0x28] sm:$0xff]
    %v48 = vld [vmem:[#allocation5 + $0x30] sm:$0xff]
    %v49 = vld [vmem:[#allocation5 + $0x38] sm:$0xff]
    %v50 = vld [vmem:[#allocation5 + $0x40] sm:$0xff]
    %v51 = vld [vmem:[#allocation5 + $0x48] sm:$0xff]
    %v52 = vld [vmem:[#allocation5 + $0x50] sm:$0xff]
    %v53 = vld [vmem:[#allocation5 + $0x58] sm:$0xff]
    %v54 = vld [vmem:[#allocation5 + $0x60] sm:$0xff]
    %v55 = vld [vmem:[#allocation5 + $0x68] sm:$0xff]
    %v56 = vld [vmem:[#allocation5 + $0x70] sm:$0xff]
    %v57 = vld [vmem:[#allocation5 + $0x78] sm:$0xff]
    %v58 = vld [vmem:[#allocation5 + $0x80] sm:$0xff]
    %v59 = vld [vmem:[#allocation5 + $0x88] sm:$0xff]
    %v60 = vld [vmem:[#allocation5 + $0x90] sm:$0xff]
    %v61 = vld [vmem:[#allocation5 + $0x98] sm:$0xff]
    %v62 = vld [vmem:[#allocation5 + $0xa0] sm:$0xff]
    %v63 = vld [vmem:[#allocation5 + $0xa8] sm:$0xff]
    %v64 = vld [vmem:[#allocation5 + $0xb0] sm:$0xff]
    %v65 = vld [vmem:[#allocation5 + $0xb8] sm:$0xff]
    %v66 = vld [vmem:[#allocation5 + $0xc0] sm:$0xff]
    %v67 = vld [vmem:[#allocation5 + $0xc8] sm:$0xff]
    %v68 = vld [vmem:[#allocation5 + $0xd0] sm:$0xff]
    %v69 = vld [vmem:[#allocation5 + $0xd8] sm:$0xff]
    %v70 = vld [vmem:[#allocation5 + $0xe0] sm:$0xff]
    %v71 = vld [vmem:[#allocation5 + $0xe8] sm:$0xff]
    %v72 = vld [vmem:[#allocation5 + $0xf0] sm:$0xff]
    %v73 = vld [vmem:[#allocation5 + $0xf8] sm:$0xff]
    %v74 = vld [vmem:[#allocation5 + $0x100] sm:$0xff]
    %v75 = vld [vmem:[#allocation5 + $0x108] sm:$0xff]
    %v76 = vld [vmem:[%s2] sm:$0x1]
    %v77 = vld [vmem:[%s2 + $0x1] sm:$0x1]
    %v78 = vld [vmem:[%s2 + $0x2] sm:$0x1]
    %v79 = vlaneseq
    %v80 = vshrl.u32 %v79, 7
    %v81 = vsub.s32 0, %v80
    %v82 = vrot.slane %v76, %v81
    %vm83 = vcmask 130048
    %v85 = vsel %vm83, %v41, 0
    %87 = vmatprep.subr.mxu0 0.0
    %88 = vmatpush1.msra.mxu0 %v42
    %89 = vmatprep.subr.mxu0 0.0
    %90 = vmatpush1.msra.mxu0 %v43
    %91 = vmatprep.subr.mxu0 0.0
    %92 = vmatpush1.msra.mxu0 0.0
    %93 = vmatprep.subr.mxu0 0.0
    %94 = vmatpush1.msra.mxu0 0.0
    %95 = vmatprep.subr.mxu0 0.0
    %96 = vmatpush1.msra.mxu0 0.0
    %97 = vmatprep.subr.mxu0 0.0
    %98 = vmatpush1.msra.mxu0 0.0
    %99 = vmatprep.subr.mxu0 0.0
    %100 = vmatpush1.msra.mxu0 0.0
    %101 = vmatprep.subr.mxu0 0.0
    %102 = vmatpush1.msra.mxu0 0.0
    %103 = vmatprep.subr.mxu0 0.0
    %104 = vmatpush1.msra.mxu0 0.0
    %105 = vmatprep.subr.mxu0 0.0
    %106 = vmatpush1.msra.mxu0 0.0
    %107 = vmatprep.subr.mxu0 0.0
    %108 = vmatpush1.msra.mxu0 0.0
    %109 = vmatprep.subr.mxu0 0.0
    %110 = vmatpush1.msra.mxu0 0.0
    %111 = vmatprep.subr.mxu0 0.0
    %112 = vmatpush1.msra.mxu0 0.0
    %113 = vmatprep.subr.mxu0 0.0
    %114 = vmatpush1.msra.mxu0 0.0
    %115 = vmatprep.subr.mxu0 0.0
    %116 = vmatpush1.msra.mxu0 0.0
    %117 = vmatprep.subr.mxu0 0.0
    %118 = vmatpush1.msra.mxu0 0.0
    %119 = vmatprep.subr.mxu0 0.0
    %120 = vmatpush1.msra.mxu0 0.0
    %121 = vmatprep.subr.mxu0 0.0
    %122 = vmatpush1.msra.mxu0 0.0
    %123 = vmatprep.subr.mxu0 0.0
    %124 = vmatpush1.msra.mxu0 0.0
    %125 = vmatprep.subr.mxu0 0.0
    %126 = vmatpush1.msra.mxu0 0.0
    %127 = vmatprep.subr.mxu0 0.0
    %128 = vmatpush1.msra.mxu0 0.0
    %129 = vmatprep.subr.mxu0 0.0
    %130 = vmatpush1.msra.mxu0 0.0
    %131 = vmatprep.subr.mxu0 0.0
    %132 = vmatpush1.msra.mxu0 0.0
    %133 = vmatprep.subr.mxu0 0.0
    %134 = vmatpush1.msra.mxu0 0.0
    %135 = vmatprep.subr.mxu0 0.0
    %136 = vmatpush1.msra.mxu0 0.0
    %137 = vmatprep.subr.mxu0 0.0
    %138 = vmatpush1.msra.mxu0 0.0
    %139 = vmatprep.subr.mxu0 0.0
    %140 = vmatpush1.msra.mxu0 0.0
    %141 = vmatprep.subr.mxu0 0.0
    %142 = vmatpush1.msra.mxu0 0.0
    %143 = vmatprep.subr.mxu0 0.0
    %144 = vmatpush1.msra.mxu0 0.0
    %145 = vmatprep.subr.mxu0 0.0
    %146 = vmatpush1.msra.mxu0 0.0
    %147 = vmatprep.subr.mxu0 0.0
    %148 = vmatpush1.msra.mxu0 0.0
    %149 = vmatprep.subr.mxu0 0.0
    %150 = vmatpush1.msra.mxu0 0.0
    %151 = vmatprep.mubr.f32.mxu0 0.0
    %152 = vmatmul.mubr.f32.gmra.mrb[0].mxu0 %v85
    %v153 = vpop.f32.mrb[0].mxu0
    %v154 = vadd.f32 %v82, %v153
    %v155 = vpop.f32.mrb[0].mxu0
    %156 = vdwg.mxu0
    %v157 = vtanh.pop %v154
    %v158 = vlaneseq
    %v159 = vshrl.u32 %v158, 7
    %v160 = vsub.s32 0, %v159
    %v161 = vrot.slane %v77, %v160
    %162 = vmatprep.subr.mxu0 0.0
    %163 = vmatpush1.msra.mxu0 %v44
    %164 = vmatprep.subr.mxu0 0.0
    %165 = vmatpush1.msra.mxu0 %v45
    %166 = vmatprep.subr.mxu0 0.0
    %167 = vmatpush1.msra.mxu0 %v46
    %168 = vmatprep.subr.mxu0 0.0
    %169 = vmatpush1.msra.mxu0 %v47
    %170 = vmatprep.subr.mxu0 0.0
    %171 = vmatpush1.msra.mxu0 %v48
    %172 = vmatprep.subr.mxu0 0.0
    %173 = vmatpush1.msra.mxu0 %v49
    %174 = vmatprep.subr.mxu0 0.0
    %175 = vmatpush1.msra.mxu0 %v50
    %176 = vmatprep.subr.mxu0 0.0
    %177 = vmatpush1.msra.mxu0 %v51
    %178 = vmatprep.subr.mxu0 0.0
    %179 = vmatpush1.msra.mxu0 %v52
    %180 = vmatprep.subr.mxu0 0.0
    %181 = vmatpush1.msra.mxu0 %v53
    %182 = vmatprep.subr.mxu0 0.0
    %183 = vmatpush1.msra.mxu0 %v54
    %184 = vmatprep.subr.mxu0 0.0
    %185 = vmatpush1.msra.mxu0 %v55
    %186 = vmatprep.subr.mxu0 0.0
    %187 = vmatpush1.msra.mxu0 %v56
    %188 = vmatprep.subr.mxu0 0.0
    %189 = vmatpush1.msra.mxu0 %v57
    %190 = vmatprep.subr.mxu0 0.0
    %191 = vmatpush1.msra.mxu0 %v58
    %192 = vmatprep.subr.mxu0 0.0
    %193 = vmatpush1.msra.mxu0 %v59
    %194 = vmatprep.subr.mxu0 0.0
    %195 = vmatpush1.msra.mxu0 0.0
    %196 = vmatprep.subr.mxu0 0.0
    %197 = vmatpush1.msra.mxu0 0.0
    %198 = vmatprep.subr.mxu0 0.0
    %199 = vmatpush1.msra.mxu0 0.0
    %200 = vmatprep.subr.mxu0 0.0
    %201 = vmatpush1.msra.mxu0 0.0
    %202 = vmatprep.subr.mxu0 0.0
    %203 = vmatpush1.msra.mxu0 0.0
    %204 = vmatprep.subr.mxu0 0.0
    %205 = vmatpush1.msra.mxu0 0.0
    %206 = vmatprep.subr.mxu0 0.0
    %207 = vmatpush1.msra.mxu0 0.0
    %208 = vmatprep.subr.mxu0 0.0
    %209 = vmatpush1.msra.mxu0 0.0
    %210 = vmatprep.subr.mxu0 0.0
    %211 = vmatpush1.msra.mxu0 0.0
    %212 = vmatprep.subr.mxu0 0.0
    %213 = vmatpush1.msra.mxu0 0.0
    %214 = vmatprep.subr.mxu0 0.0
    %215 = vmatpush1.msra.mxu0 0.0
    %216 = vmatprep.subr.mxu0 0.0
    %217 = vmatpush1.msra.mxu0 0.0
    %218 = vmatprep.subr.mxu0 0.0
    %219 = vmatpush1.msra.mxu0 0.0
    %220 = vmatprep.subr.mxu0 0.0
    %221 = vmatpush1.msra.mxu0 0.0
    %222 = vmatprep.subr.mxu0 0.0
    %223 = vmatpush1.msra.mxu0 0.0
    %224 = vmatprep.subr.mxu0 0.0
    %225 = vmatpush1.msra.mxu0 0.0
    %226 = vmatprep.mubr.f32.mxu0 0.0
    %227 = vmatmul.mubr.f32.gmra.mrb[0].mxu0 %v157
    %v228 = vpop.f32.mrb[0].mxu0
    %v229 = vadd.f32 %v161, %v228
    %v230 = vpop.f32.mrb[0].mxu0
    %231 = vdwg.mxu0
    %v232 = vtanh.pop %v229
    %v233 = vlaneseq
    %v234 = vshrl.u32 %v233, 7
    %v235 = vsub.s32 0, %v234
    %v236 = vrot.slane %v78, %v235
    %237 = vmatprep.subr.mxu0 0.0
    %238 = vmatpush1.msra.mxu0 %v60
    %239 = vmatprep.subr.mxu0 0.0
    %240 = vmatpush1.msra.mxu0 %v61
    %241 = vmatprep.subr.mxu0 0.0
    %242 = vmatpush1.msra.mxu0 %v62
    %243 = vmatprep.subr.mxu0 0.0
    %244 = vmatpush1.msra.mxu0 %v63
    %245 = vmatprep.subr.mxu0 0.0
    %246 = vmatpush1.msra.mxu0 %v64
    %247 = vmatprep.subr.mxu0 0.0
    %248 = vmatpush1.msra.mxu0 %v65
    %249 = vmatprep.subr.mxu0 0.0
    %250 = vmatpush1.msra.mxu0 %v66
    %251 = vmatprep.subr.mxu0 0.0
    %252 = vmatpush1.msra.mxu0 %v67
    %253 = vmatprep.subr.mxu0 0.0
    %254 = vmatpush1.msra.mxu0 %v68
    %255 = vmatprep.subr.mxu0 0.0
    %256 = vmatpush1.msra.mxu0 %v69
    %257 = vmatprep.subr.mxu0 0.0
    %258 = vmatpush1.msra.mxu0 %v70
    %259 = vmatprep.subr.mxu0 0.0
    %260 = vmatpush1.msra.mxu0 %v71
    %261 = vmatprep.subr.mxu0 0.0
    %262 = vmatpush1.msra.mxu0 %v72
    %263 = vmatprep.subr.mxu0 0.0
    %264 = vmatpush1.msra.mxu0 %v73
    %265 = vmatprep.subr.mxu0 0.0
    %266 = vmatpush1.msra.mxu0 %v74
    %267 = vmatprep.subr.mxu0 0.0
    %268 = vmatpush1.msra.mxu0 %v75
    %269 = vmatprep.subr.mxu0 0.0
    %270 = vmatpush1.msra.mxu0 0.0
    %271 = vmatprep.subr.mxu0 0.0
    %272 = vmatpush1.msra.mxu0 0.0
    %273 = vmatprep.subr.mxu0 0.0
    %274 = vmatpush1.msra.mxu0 0.0
    %275 = vmatprep.subr.mxu0 0.0
    %276 = vmatpush1.msra.mxu0 0.0
    %277 = vmatprep.subr.mxu0 0.0
    %278 = vmatpush1.msra.mxu0 0.0
    %279 = vmatprep.subr.mxu0 0.0
    %280 = vmatpush1.msra.mxu0 0.0
    %281 = vmatprep.subr.mxu0 0.0
    %282 = vmatpush1.msra.mxu0 0.0
    %283 = vmatprep.subr.mxu0 0.0
    %284 = vmatpush1.msra.mxu0 0.0
    %285 = vmatprep.subr.mxu0 0.0
    %286 = vmatpush1.msra.mxu0 0.0
    %287 = vmatprep.subr.mxu0 0.0
    %288 = vmatpush1.msra.mxu0 0.0
    %289 = vmatprep.subr.mxu0 0.0
    %290 = vmatpush1.msra.mxu0 0.0
    %291 = vmatprep.subr.mxu0 0.0
    %292 = vmatpush1.msra.mxu0 0.0
    %293 = vmatprep.subr.mxu0 0.0
    %294 = vmatpush1.msra.mxu0 0.0
    %295 = vmatprep.subr.mxu0 0.0
    %296 = vmatpush1.msra.mxu0 0.0
    %297 = vmatprep.subr.mxu0 0.0
    %298 = vmatpush1.msra.mxu0 0.0
    %299 = vmatprep.subr.mxu0 0.0
    %300 = vmatpush1.msra.mxu0 0.0
    %301 = vmatprep.mubr.f32.mxu0 0.0
    %302 = vmatmul.mubr.f32.gmra.mrb[0].mxu0 %v232
    %v303 = vpop.f32.mrb[0].mxu0
    %v304 = vadd.f32 %v236, %v303
    %v305 = vpop.f32.mrb[0].mxu0
    %306 = vdwg.mxu0
    %v307 = vlaneseq
    %v308 = vand.u32 %v307, 127
    %vm309 = vcmp.lt.s32.totalorder %v308, 4
    %v310 = vmul.f32 %v304, 0.5
    %v311 = vmul.f32 %v310, 1.442695
    %v312 = vpow.pop %v311
    %v313 = vsel %vm309, %v304, %v312
    %314 = vst [vmem:[#allocation7] sm:$0xff] %v313
    // Predicated region
    $region22: #{tpu_custom_call.1} parent=1 // pred_check
      _
    $region23: #{tpu_custom_call.1} parent=1 // pred_check_branch
      %316 = sbr.rel (0) target = $region25
    $region24: #{tpu_custom_call.1} parent=1 // pred_region
      %s318 = ssub.s32 128, 128
      %319 = vsyncadd [#allocation4], %s318
      %s321 = sshll.u32 [#allocation7], 4
      %s322 = int_to_ptr.vmem [resolvable:$true] %s321
      %324 = dma.vmem_to_hbm [thread:$0]  %s322, 128, %s3, [#allocation4]
    $region25: #{tpu_custom_call.1} parent=1 // pred_fallthru
      _
    // Predicated region
    $region26: #{tpu_custom_call.1} parent=1 // pred_check
      _
    $region27: #{tpu_custom_call.1} parent=1 // pred_check_branch
      %326 = sbr.rel (0) target = $region29
    $region28: #{tpu_custom_call.1} parent=1 // pred_region
      %327 = dma.done [#allocation4], 128
    $region29: #{tpu_custom_call.1} parent=1 // pred_fallthru
      _
    %328 = vsyncpa [#allocation3], 1
    %329 = vsyncpa [#allocation6], 1
    %330 = vsyncpa [#allocation4], 1

</llo_original>
